<compile_context>
chip_gen: v7x
topology: tpu7x:2x2x1
jax: 0.10.0
libtpu: 0.0.40
codegen_flags: <defaults>
</compile_context>

<pallas_src>
import functools
import math

import jax
import jax.numpy as jnp
from jax import lax
from jax.experimental import pallas as pl
from jax.experimental.pallas import tpu as pltpu

EPS = 1e-8
_DIAG_FILL = -1.0   # torch fills diag(G) with -1 before taking the row max
_PAD_FILL = -1.5    # strictly below any unit-vector dot (incl. bf16 rounding slack)
_INIT_FILL = -2.0   # running-max init: the first column tile always wins


def _round_up(a, m):
    return (a + m - 1) // m * m


def _vmem_capacity():
    try:
        return int(pltpu.get_tpu_info().vmem_capacity_bytes)
    except Exception:
        return 64 << 20   # conservative floor = v7x per-TensorCore VMEM


def _nn_argmax_kernel(xr_ref, xct_ref, idx_ref, mx_ref, *, tr, tc, true_b, padded):
    """Per-row nearest neighbor (max inner product, self excluded) of the Gram matrix.

    grid = (row blocks ["parallel"], column blocks ["arbitrary"]).  The normalized row
    block, the (tr,1) running-max scratch and the (tr,1) int32 output block stay
    resident across the column axis; column blocks of the pre-transposed operand
    stream through the MXU.
    """
    i = pl.program_id(0)
    j = pl.program_id(1)
    row0 = i * tr
    col0 = j * tc

    @pl.when(j == 0)
    def _init():
        mx_ref[...] = jnp.full(mx_ref.shape, _INIT_FILL, dtype=jnp.float32)
        idx_ref[...] = jnp.zeros(idx_ref.shape, dtype=jnp.int32)

    # Gram tile: canonical (M,K)x(K,N) on the MXU (operand pre-transposed in wrapper).
    prec = lax.Precision.HIGHEST if xr_ref.dtype == jnp.float32 else lax.Precision.DEFAULT
    dots = lax.dot_general(
        xr_ref[...], xct_ref[...],
        dimension_numbers=(((1,), (0,)), ((), ())),
        preferred_element_type=jnp.float32,
        precision=prec)                                             # (tr, tc) f32

    # Global column ids, lane-shaped (1, tc): shared by the pad mask and the argmax.
    gcol = col0 + lax.broadcasted_iota(jnp.int32, (1, tc), 1)

    if padded:  # static: only traced when the batch was padded at all
        dots = jnp.where(gcol >= true_b, _PAD_FILL, dots)

    def _update(d):
        # Online row max + first-occurrence argmax, merged into the running state.
        tile_max = jnp.max(d, axis=1, keepdims=True)                          # (tr, 1)
        tile_arg = jnp.min(
            jnp.where(d == tile_max, gcol, jnp.iinfo(jnp.int32).max),
            axis=1, keepdims=True)                                            # (tr, 1)
        better = tile_max > mx_ref[...]
        idx_ref[...] = jnp.where(better, tile_arg, idx_ref[...])
        mx_ref[...] = jnp.where(better, tile_max, mx_ref[...])

    # Diagonal fill is only needed on tiles that intersect the diagonal; gate it so the
    # steady-state (off-diagonal) tiles carry no row iota / compare / select at all.
    on_diag = jnp.logical_and(row0 < col0 + tc, col0 < row0 + tr)

    @pl.when(on_diag)
    def _with_diag():
        grow = row0 + lax.broadcasted_iota(jnp.int32, (tr, 1), 0)
        _update(jnp.where(grow == gcol, _DIAG_FILL, dots))

    @pl.when(jnp.logical_not(on_diag))
    def _without_diag():
        _update(dots)


def _pick_tiles(B, D, itemsize):
    """Choose (row_tile, col_tile, padded_B).  col_tile is either a multiple of 128 or
    the full padded batch; row_tile is a multiple of 8; padded_B is a multiple of both."""
    cap = _vmem_capacity()
    if B <= 1024:
        nr = 2 if B >= 256 else 1                 # >= 2 row blocks -> both v7x cores busy
        tr = _round_up(-(-B // nr), 8)
        b_pad = nr * tr
        # single column pass only if the working set comfortably fits
        if 2 * (tr + b_pad) * D * itemsize + 8 * tr * b_pad * 4 < int(cap * 0.5):
            return tr, b_pad, b_pad
    tc = 256
    tr = 1024 if cap > (100 << 20) else 512       # big resident rows on 128 MiB parts
    budget = int(cap * 0.55)
    while tr > 256 and 2 * (tr + tc) * D * itemsize + 8 * tr * tc * 4 > budget:
        tr //= 2
    b_pad = _round_up(B, max(tr, tc))
    return tr, tc, b_pad


def koleo_loss(student_output, *, eps=EPS, row_block=None, col_block=None,
               gram_dtype=jnp.float32):
    """KoLeo loss for a (B, D) batch of student embeddings.  Returns a scalar f32.

    gram_dtype=jnp.bfloat16 runs the Gram/argmax in bf16 (~3x MXU, half the HBM bytes);
    the winning pair's distance is always recomputed exactly in f32, so the only effect
    is possible argmax flips between near-tied neighbors.
    """
    x = jnp.asarray(student_output, jnp.float32)
    B, D = x.shape

    # Prologue in plain JAX: normalize once (torch: x / max(||x||, eps)).
    nrm = jnp.sqrt(jnp.sum(x * x, axis=-1, keepdims=True))
    xn = x / jnp.maximum(nrm, eps)

    itemsize = jnp.dtype(gram_dtype).itemsize
    if row_block is None and col_block is None:
        tr, tc, b_pad = _pick_tiles(B, D, itemsize)
    else:
        tr = _round_up(int(row_block or 256), 8)
        tc = _round_up(int(col_block or 256), 128)
        b_pad = _round_up(B, math.lcm(tr, tc))
        tc = min(tc, b_pad)

    padded = b_pad > B
    xg = xn.astype(gram_dtype)
    if padded:
        xg = jnp.pad(xg, ((0, b_pad - B), (0, 0)))
    xgt = xg.T                       # (D, b_pad): transposed once -> canonical MXU tiles

    grid = (b_pad // tr, b_pad // tc)

    # VMEM budget: double-buffered row/col blocks + a few (tr, tc) f32 temporaries,
    # capped below the physical capacity (headroom for compiler scratch, esp. v7x).
    est = 2 * (tr + tc) * D * itemsize + 8 * tr * tc * 4 + (2 << 20)
    cap = _vmem_capacity() - (12 << 20)
    vmem_limit = int(min(max(est, 32 << 20), max(cap, 32 << 20)))

    kernel = functools.partial(_nn_argmax_kernel, tr=tr, tc=tc, true_b=B, padded=padded)

    nn_idx = pl.pallas_call(
        kernel,
        out_shape=jax.ShapeDtypeStruct((b_pad, 1), jnp.int32),
        grid_spec=pltpu.PrefetchScalarGridSpec(
            num_scalar_prefetch=0,
            grid=grid,
            in_specs=[
                pl.BlockSpec((tr, D), lambda i, j: (i, 0)),   # resident row block
                pl.BlockSpec((D, tc), lambda i, j: (0, j)),   # streamed xn^T column block
            ],
            out_specs=pl.BlockSpec((tr, 1), lambda i, j: (i, 0)),
            scratch_shapes=[pltpu.VMEM((tr, 1), jnp.float32)],   # running row max
        ),
        compiler_params=pltpu.CompilerParams(
            dimension_semantics=("parallel", "arbitrary"),
            vmem_limit_bytes=vmem_limit,
        ),
    )(xg, xgt)

    # Exact epilogue in plain JAX: restore torch's (x - x[I] + eps) pairwise distance
    # for the winning pairs only -- no sqrt(2 - 2m) cancellation for near-duplicates.
    I = nn_idx[:B, 0]
    diff = xn - xn[I] + eps
    dist = jnp.sqrt(jnp.sum(diff * diff, axis=-1))
    return -jnp.mean(jnp.log(dist + eps))


def _koleo_loss_ref(x, eps=EPS):
    """Pure-JAX reference mirroring the PyTorch module (exact f32 Gram, like torch.mm)."""
    x = jnp.asarray(x, jnp.float32)
    nrm = jnp.sqrt(jnp.sum(x * x, axis=-1, keepdims=True))
    xn = x / jnp.maximum(nrm, eps)
    dots = jnp.matmul(xn, xn.T, precision=lax.Precision.HIGHEST)
    n = x.shape[0]
    dots = dots.at[jnp.arange(n), jnp.arange(n)].set(-1.0)
    idx = jnp.argmax(dots, axis=1)
    diff = xn - xn[idx] + eps
    dist = jnp.sqrt(jnp.sum(diff * diff, axis=-1))
    return -jnp.mean(jnp.log(dist + eps))


if __name__ == "__main__":
    key = jax.random.PRNGKey(0)
    k1, k2 = jax.random.split(key)

    # Small shape matching the module's (batch, dim) convention: single-tile path.
    B, D = 8, 32
    x1 = jax.random.normal(k1, (B, D), dtype=jnp.float32)
    loss1 = koleo_loss(x1)
    jax.block_until_ready(loss1)
    ref1 = _koleo_loss_ref(x1)
    assert jnp.allclose(loss1, ref1, atol=1e-5, rtol=1e-5), (loss1, ref1)

    # Tiled path: 2x2 grid -> diagonal-tile gating, online argmax across column tiles,
    # padded columns in the trailing column tile, 2 "parallel" row blocks.
    B2, D2 = 200, 64
    x2 = jax.random.normal(k2, (B2, D2), dtype=jnp.float32)
    loss2 = koleo_loss(x2, row_block=128, col_block=128)
    jax.block_until_ready(loss2)
    ref2 = _koleo_loss_ref(x2)
    assert jnp.allclose(loss2, ref2, atol=1e-5, rtol=1e-5), (loss2, ref2)

    # bf16 Gram fast path (argmax in bf16, winner distance recomputed exactly in f32).
    # Near-tie argmax flips are possible, so only a loose check here.
    loss3 = koleo_loss(x2, row_block=128, col_block=128, gram_dtype=jnp.bfloat16)
    jax.block_until_ready(loss3)
    assert jnp.allclose(loss3, ref2, atol=5e-3, rtol=0.0), (loss3, ref2)

    print("KERNEL_OK")
</pallas_src>

<mosaic_0001>
module attributes {stable_mosaic.version = 11 : i64} {
  func.func @_nn_argmax_kernel(%arg0: i32, %arg1: i32, %arg2: memref<8x32xf32, #tpu.memory_space<vmem>>, %arg3: memref<32x8xf32, #tpu.memory_space<vmem>>, %arg4: memref<8x1xi32, #tpu.memory_space<vmem>>, %arg5: memref<8x1xf32, #tpu.memory_space<vmem>>) attributes {dimension_semantics = [#tpu.dimension_semantics<parallel>, #tpu.dimension_semantics<arbitrary>], iteration_bounds = array<i64: 1, 1>, scalar_prefetch = 0 : i64, scratch_operands = 1 : i64, tpu.core_type = #tpu.core_type<tc>, window_params = [{transform_indices = @transform_0, window_bounds = array<i64: 8, 32>}, {transform_indices = @transform_1, window_bounds = array<i64: 32, 8>}, {transform_indices = @transform_2, window_bounds = array<i64: 8, 1>}]} {
    %c8_i32 = arith.constant 8 : i32
    %0 = arith.muli %arg0, %c8_i32 : i32
    %c8_i32_0 = arith.constant 8 : i32
    %1 = arith.muli %arg1, %c8_i32_0 : i32
    %c0_i32 = arith.constant 0 : i32
    %2 = arith.cmpi eq, %arg1, %c0_i32 : i32
    %3 = arith.extui %2 : i1 to i32
    %c0_i32_1 = arith.constant 0 : i32
    %4 = arith.cmpi ne, %3, %c0_i32_1 : i32
    scf.if %4 {
      %cst_9 = arith.constant -2.000000e+00 : f32
      %21 = vector.broadcast %cst_9 : f32 to vector<8x1xf32>
      %c0_10 = arith.constant 0 : index
      %c0_11 = arith.constant 0 : index
      %22 = vector.load %arg5[%c0_10, %c0_11] : memref<8x1xf32, #tpu.memory_space<vmem>>, vector<8x1xf32>
      tpu.vector_store %arg5[%c0_10, %c0_11], %21 {strides = array<i32>} : memref<8x1xf32, #tpu.memory_space<vmem>>, vector<8x1xf32>,
      %c0_i32_12 = arith.constant 0 : i32
      %23 = vector.broadcast %c0_i32_12 : i32 to vector<8x1xi32>
      %c0_13 = arith.constant 0 : index
      %c0_14 = arith.constant 0 : index
      %24 = vector.load %arg4[%c0_13, %c0_14] : memref<8x1xi32, #tpu.memory_space<vmem>>, vector<8x1xi32>
      tpu.vector_store %arg4[%c0_13, %c0_14], %23 {strides = array<i32>} : memref<8x1xi32, #tpu.memory_space<vmem>>, vector<8x1xi32>,
    } else {
    }
    %c0 = arith.constant 0 : index
    %c0_2 = arith.constant 0 : index
    %5 = vector.load %arg2[%c0, %c0_2] : memref<8x32xf32, #tpu.memory_space<vmem>>, vector<8x32xf32>
    %c0_3 = arith.constant 0 : index
    %c0_4 = arith.constant 0 : index
    %6 = vector.load %arg3[%c0_3, %c0_4] : memref<32x8xf32, #tpu.memory_space<vmem>>, vector<32x8xf32>
    %cst = arith.constant dense<0.000000e+00> : vector<8x8xf32>
    %7 = tpu.matmul %5, %6, %cst {dimension_numbers = #tpu.dot_dimension_numbers<[1], [0], [0], [1], [0, 0, 1, 1], [], []>, precision = #tpu.contract_precision<fp32>} : vector<8x32xf32>, vector<32x8xf32>, vector<8x8xf32> -> vector<8x8xf32>
    %8 = tpu.iota {dimensions = array<i32: 1>} : vector<1x8xi32>
    %9 = vector.broadcast %1 : i32 to vector<1x8xi32>
    %10 = arith.addi %9, %8 : vector<1x8xi32>
    %c8_i32_5 = arith.constant 8 : i32
    %11 = arith.addi %1, %c8_i32_5 : i32
    %12 = arith.cmpi slt, %0, %11 : i32
    %c8_i32_6 = arith.constant 8 : i32
    %13 = arith.addi %0, %c8_i32_6 : i32
    %14 = arith.cmpi slt, %1, %13 : i32
    %15 = arith.andi %12, %14 : i1
    %16 = arith.extui %15 : i1 to i32
    %c0_i32_7 = arith.constant 0 : i32
    %17 = arith.cmpi ne, %16, %c0_i32_7 : i32
    scf.if %17 {
      %21 = tpu.iota {dimensions = array<i32: 0>} : vector<8x1xi32>
      %22 = vector.broadcast %0 : i32 to vector<8x1xi32>
      %23 = arith.addi %22, %21 : vector<8x1xi32>
      %24 = vector.broadcast %23 : vector<8x1xi32> to vector<8x8xi32>
      %25 = vector.broadcast %10 : vector<1x8xi32> to vector<8x8xi32>
      %26 = arith.cmpi eq, %24, %25 : vector<8x8xi32>
      %cst_9 = arith.constant -1.000000e+00 : f32
      %27 = vector.broadcast %cst_9 : f32 to vector<8x8xf32>
      %28 = arith.select %26, %27, %7 : vector<8x8xi1>, vector<8x8xf32>
      %cst_10 = arith.constant dense<0xFF800000> : vector<8xf32>
      %29 = vector.multi_reduction <maximumf>, %28, %cst_10 [1] : vector<8x8xf32> to vector<8xf32>
      %30 = vector.shape_cast %29 : vector<8xf32> to vector<8x1xf32>
      %31 = vector.broadcast %30 : vector<8x1xf32> to vector<8x8xf32>
      %32 = arith.cmpf oeq, %28, %31 : vector<8x8xf32>
      %c2147483647_i32 = arith.constant 2147483647 : i32
      %33 = vector.shape_cast %10 : vector<1x8xi32> to vector<1x8xi32>
      %34 = vector.broadcast %33 : vector<1x8xi32> to vector<8x8xi32>
      %35 = vector.broadcast %c2147483647_i32 : i32 to vector<8x8xi32>
      %36 = arith.select %32, %34, %35 : vector<8x8xi1>, vector<8x8xi32>
      %cst_11 = arith.constant dense<2147483647> : vector<8xi32>
      %37 = vector.multi_reduction <minsi>, %36, %cst_11 [1] : vector<8x8xi32> to vector<8xi32>
      %38 = vector.shape_cast %37 : vector<8xi32> to vector<8x1xi32>
      %c0_12 = arith.constant 0 : index
      %c0_13 = arith.constant 0 : index
      %39 = vector.load %arg5[%c0_12, %c0_13] : memref<8x1xf32, #tpu.memory_space<vmem>>, vector<8x1xf32>
      %40 = arith.cmpf ogt, %30, %39 : vector<8x1xf32>
      %c0_14 = arith.constant 0 : index
      %c0_15 = arith.constant 0 : index
      %41 = vector.load %arg4[%c0_14, %c0_15] : memref<8x1xi32, #tpu.memory_space<vmem>>, vector<8x1xi32>
      %42 = arith.select %40, %38, %41 : vector<8x1xi1>, vector<8x1xi32>
      %c0_16 = arith.constant 0 : index
      %c0_17 = arith.constant 0 : index
      %43 = vector.load %arg4[%c0_16, %c0_17] : memref<8x1xi32, #tpu.memory_space<vmem>>, vector<8x1xi32>
      tpu.vector_store %arg4[%c0_16, %c0_17], %42 {strides = array<i32>} : memref<8x1xi32, #tpu.memory_space<vmem>>, vector<8x1xi32>,
      %c0_18 = arith.constant 0 : index
      %c0_19 = arith.constant 0 : index
      %44 = vector.load %arg5[%c0_18, %c0_19] : memref<8x1xf32, #tpu.memory_space<vmem>>, vector<8x1xf32>
      %45 = arith.select %40, %30, %44 : vector<8x1xi1>, vector<8x1xf32>
      %c0_20 = arith.constant 0 : index
      %c0_21 = arith.constant 0 : index
      %46 = vector.load %arg5[%c0_20, %c0_21] : memref<8x1xf32, #tpu.memory_space<vmem>>, vector<8x1xf32>
      tpu.vector_store %arg5[%c0_20, %c0_21], %45 {strides = array<i32>} : memref<8x1xf32, #tpu.memory_space<vmem>>, vector<8x1xf32>,
    } else {
    }
    %true = arith.constant true
    %18 = arith.xori %15, %true : i1
    %19 = arith.extui %18 : i1 to i32
    %c0_i32_8 = arith.constant 0 : i32
    %20 = arith.cmpi ne, %19, %c0_i32_8 : i32
    scf.if %20 {
      %cst_9 = arith.constant dense<0xFF800000> : vector<8xf32>
      %21 = vector.multi_reduction <maximumf>, %7, %cst_9 [1] : vector<8x8xf32> to vector<8xf32>
      %22 = vector.shape_cast %21 : vector<8xf32> to vector<8x1xf32>
      %23 = vector.broadcast %22 : vector<8x1xf32> to vector<8x8xf32>
      %24 = arith.cmpf oeq, %7, %23 : vector<8x8xf32>
      %c2147483647_i32 = arith.constant 2147483647 : i32
      %25 = vector.shape_cast %10 : vector<1x8xi32> to vector<1x8xi32>
      %26 = vector.broadcast %25 : vector<1x8xi32> to vector<8x8xi32>
      %27 = vector.broadcast %c2147483647_i32 : i32 to vector<8x8xi32>
      %28 = arith.select %24, %26, %27 : vector<8x8xi1>, vector<8x8xi32>
      %cst_10 = arith.constant dense<2147483647> : vector<8xi32>
      %29 = vector.multi_reduction <minsi>, %28, %cst_10 [1] : vector<8x8xi32> to vector<8xi32>
      %30 = vector.shape_cast %29 : vector<8xi32> to vector<8x1xi32>
      %c0_11 = arith.constant 0 : index
      %c0_12 = arith.constant 0 : index
      %31 = vector.load %arg5[%c0_11, %c0_12] : memref<8x1xf32, #tpu.memory_space<vmem>>, vector<8x1xf32>
      %32 = arith.cmpf ogt, %22, %31 : vector<8x1xf32>
      %c0_13 = arith.constant 0 : index
      %c0_14 = arith.constant 0 : index
      %33 = vector.load %arg4[%c0_13, %c0_14] : memref<8x1xi32, #tpu.memory_space<vmem>>, vector<8x1xi32>
      %34 = arith.select %32, %30, %33 : vector<8x1xi1>, vector<8x1xi32>
      %c0_15 = arith.constant 0 : index
      %c0_16 = arith.constant 0 : index
      %35 = vector.load %arg4[%c0_15, %c0_16] : memref<8x1xi32, #tpu.memory_space<vmem>>, vector<8x1xi32>
      tpu.vector_store %arg4[%c0_15, %c0_16], %34 {strides = array<i32>} : memref<8x1xi32, #tpu.memory_space<vmem>>, vector<8x1xi32>,
      %c0_17 = arith.constant 0 : index
      %c0_18 = arith.constant 0 : index
      %36 = vector.load %arg5[%c0_17, %c0_18] : memref<8x1xf32, #tpu.memory_space<vmem>>, vector<8x1xf32>
      %37 = arith.select %32, %22, %36 : vector<8x1xi1>, vector<8x1xf32>
      %c0_19 = arith.constant 0 : index
      %c0_20 = arith.constant 0 : index
      %38 = vector.load %arg5[%c0_19, %c0_20] : memref<8x1xf32, #tpu.memory_space<vmem>>, vector<8x1xf32>
      tpu.vector_store %arg5[%c0_19, %c0_20], %37 {strides = array<i32>} : memref<8x1xf32, #tpu.memory_space<vmem>>, vector<8x1xf32>,
    } else {
    }
    return
  }
  func.func @transform_0(%arg0: i32, %arg1: i32) -> (i32, i32) {
    %c0_i32 = arith.constant 0 : i32
    %c0_i32_0 = arith.constant 0 : i32
    return %arg0, %c0_i32 : i32, i32
  }
  func.func @transform_1(%arg0: i32, %arg1: i32) -> (i32, i32) {
    %c0_i32 = arith.constant 0 : i32
    %c0_i32_0 = arith.constant 0 : i32
    return %c0_i32, %arg1 : i32, i32
  }
  func.func @transform_2(%arg0: i32, %arg1: i32) -> (i32, i32) {
    %c0_i32 = arith.constant 0 : i32
    %c0_i32_0 = arith.constant 0 : i32
    return %arg0, %c0_i32 : i32, i32
  }
}

</mosaic_0001>

<llo_original>
// kernel: tpu_custom_call.1
$region0: #{tpu_custom_call.1}
  #allocation0 [shape = 'u32[]', space=smem, size = 0x4, offset = 0x4, fixed_abs, tag = 'smem constant byte address 0x4 - core index']
  #allocation1 [shape = 'u32[144,128]{1,0:T(1,128)}', space=vmem, size = 0x12000, scoped, tag = 'internal scratch']
  #allocation2 [shape = 'f32[8,1]{1,0:T(8,128)}', space=vmem, size = 0x1000, scoped, tag = 'scratch operand']
  %s0 = inlined_call_operand.vmem [shape: f32[8,32], index: 0, kind: input, shape index: {}]
  %s1 = inlined_call_operand.vmem [shape: f32[32,8], index: 1, kind: input, shape index: {}]
  %s2 = inlined_call_operand.vmem [shape: s32[8,1], index: 2, kind: output, shape index: {}]
  %s3 = sld [smem:[#allocation0]]
  $region30: #{tpu_custom_call.1} parent=0
    _
  %s5 = ssub.s32 1, %s3
  %s6 = scalar_select 0, %s5, %s3
  // Predicated region
  $region2: #{tpu_custom_call.1} parent=0 // pred_check
    _
  $region3: #{tpu_custom_call.1} parent=0 // pred_check_branch
    %8 = sbr.rel (0) target = $region5
  $region4: #{tpu_custom_call.1} parent=0 // pred_region
    _
  $region5: #{tpu_custom_call.1} parent=0 // pred_fallthru
    _
  // Predicated region
  $region6: #{tpu_custom_call.1} parent=0 // pred_check
    _
  $region7: #{tpu_custom_call.1} parent=0 // pred_check_branch
    %10 = sbr.rel (0) target = $region9
  $region8: #{tpu_custom_call.1} parent=0 // pred_region
    _
  $region9: #{tpu_custom_call.1} parent=0 // pred_fallthru
    _
  %s11 = smul.u32 0, 8
  %s12 = smul.u32 0, 8
  %p13 = scmp.eq.s32.totalorder 0, 0
  // Predicated region
  $region10: #{tpu_custom_call.1} parent=0 // pred_check
    %p14 = pneg %p13
  $region11: #{tpu_custom_call.1} parent=0 // pred_check_branch
    %16 = sbr.rel (%p14) target = $region13
  $region12: #{tpu_custom_call.1} parent=0 // pred_region
    %vm17 = vcmask 7168
    %18 = vst.msk [vmem:[#allocation2] sm:$0xff] %vm17, -2.0
    %19 = vst.msk [vmem:[%s2] sm:$0xff] %vm17, 0
  $region13: #{tpu_custom_call.1} parent=0 // pred_fallthru
    _
  %v20 = vld [vmem:[%s0] sm:$0xff]
  %v21 = vld [vmem:[%s1] sm:$0xff]
  %v22 = vld [vmem:[%s1 + $0x8] sm:$0xff]
  %v23 = vld [vmem:[%s1 + $0x10] sm:$0xff]
  %v24 = vld [vmem:[%s1 + $0x18] sm:$0xff]
  %vm25 = vcmask 261120
  %v27 = vsel %vm25, %v20, 0
  %29 = vmatprep.subr.mxu0 0.0
  %v30 = vand.u32 %v21, 4294901760
  %31 = vmatpush1.msra.mxu0 %v30
  %32 = vmatprep.subr.mxu0 0.0
  %v33 = vand.u32 %v22, 4294901760
  %34 = vmatpush1.msra.mxu0 %v33
  %35 = vmatprep.subr.mxu0 0.0
  %v36 = vand.u32 %v23, 4294901760
  %37 = vmatpush1.msra.mxu0 %v36
  %38 = vmatprep.subr.mxu0 0.0
  %v39 = vand.u32 %v24, 4294901760
  %40 = vmatpush1.msra.mxu0 %v39
  %41 = vmatprep.subr.mxu0 0.0
  %42 = vmatpush1.msra.mxu0 0.0
  %43 = vmatprep.subr.mxu0 0.0
  %44 = vmatpush1.msra.mxu0 0.0
  %45 = vmatprep.subr.mxu0 0.0
  %46 = vmatpush1.msra.mxu0 0.0
  %47 = vmatprep.subr.mxu0 0.0
  %48 = vmatpush1.msra.mxu0 0.0
  %49 = vmatprep.subr.mxu0 0.0
  %50 = vmatpush1.msra.mxu0 0.0
  %51 = vmatprep.subr.mxu0 0.0
  %52 = vmatpush1.msra.mxu0 0.0
  %53 = vmatprep.subr.mxu0 0.0
  %54 = vmatpush1.msra.mxu0 0.0
  %55 = vmatprep.subr.mxu0 0.0
  %56 = vmatpush1.msra.mxu0 0.0
  %57 = vmatprep.subr.mxu0 0.0
  %58 = vmatpush1.msra.mxu0 0.0
  %59 = vmatprep.subr.mxu0 0.0
  %60 = vmatpush1.msra.mxu0 0.0
  %61 = vmatprep.subr.mxu0 0.0
  %62 = vmatpush1.msra.mxu0 0.0
  %63 = vmatprep.subr.mxu0 0.0
  %64 = vmatpush1.msra.mxu0 0.0
  %65 = vmatprep.subr.mxu0 0.0
  %66 = vmatpush1.msra.mxu0 0.0
  %67 = vmatprep.subr.mxu0 0.0
  %68 = vmatpush1.msra.mxu0 0.0
  %69 = vmatprep.subr.mxu0 0.0
  %70 = vmatpush1.msra.mxu0 0.0
  %71 = vmatprep.subr.mxu0 0.0
  %72 = vmatpush1.msra.mxu0 0.0
  %73 = vmatprep.subr.mxu0 0.0
  %74 = vmatpush1.msra.mxu0 0.0
  %75 = vmatprep.subr.mxu0 0.0
  %76 = vmatpush1.msra.mxu0 0.0
  %77 = vmatprep.subr.mxu0 0.0
  %78 = vmatpush1.msra.mxu0 0.0
  %79 = vmatprep.subr.mxu0 0.0
  %80 = vmatpush1.msra.mxu0 0.0
  %81 = vmatprep.subr.mxu0 0.0
  %82 = vmatpush1.msra.mxu0 0.0
  %83 = vmatprep.subr.mxu0 0.0
  %84 = vmatpush1.msra.mxu0 0.0
  %85 = vmatprep.subr.mxu0 0.0
  %86 = vmatpush1.msra.mxu0 0.0
  %87 = vmatprep.subr.mxu0 0.0
  %88 = vmatpush1.msra.mxu0 0.0
  %89 = vmatprep.subr.mxu0 0.0
  %90 = vmatpush1.msra.mxu0 0.0
  %91 = vmatprep.subr.mxu0 0.0
  %92 = vmatpush1.msra.mxu0 0.0
  %93 = vmatprep.subr.mxu0 0.0
  %94 = vmatpush1.msra.mxu0 0.0
  %95 = vmatprep.subr.mxu0 0.0
  %96 = vmatpush1.msra.mxu0 0.0
  %97 = vmatprep.mubr.f32.mxu0 0.0
  %v98 = vand.u32 %v27, 4294901760
  %v99 = vsub.f32 %v27, %v98
  %v100 = vand.u32 %v99, 4294901760
  %v101 = vsub.f32 %v99, %v100
  %v102 = vand.u32 %v101, 4294901760
  %103 = vmatmul.mubr.f32.gmra.mrb[0].mxu0 %v102
  %v104 = vpop.f32.mrb[0].mxu0
  %v105 = vadd.f32 0.0, %v104
  %v106 = vpop.f32.mrb[0].mxu0
  %107 = vdwg.mxu0
  %108 = vmatprep.subr.mxu0 0.0
  %v109 = vand.u32 %v21, 4294901760
  %v110 = vsub.f32 %v21, %v109
  %v111 = vand.u32 %v110, 4294901760
  %v112 = vsub.f32 %v110, %v111
  %v113 = vand.u32 %v112, 4294901760
  %114 = vmatpush1.msra.mxu0 %v113
  %115 = vmatprep.subr.mxu0 0.0
  %v116 = vand.u32 %v22, 4294901760
  %v117 = vsub.f32 %v22, %v116
  %v118 = vand.u32 %v117, 4294901760
  %v119 = vsub.f32 %v117, %v118
  %v120 = vand.u32 %v119, 4294901760
  %121 = vmatpush1.msra.mxu0 %v120
  %122 = vmatprep.subr.mxu0 0.0
  %v123 = vand.u32 %v23, 4294901760
  %v124 = vsub.f32 %v23, %v123
  %v125 = vand.u32 %v124, 4294901760
  %v126 = vsub.f32 %v124, %v125
  %v127 = vand.u32 %v126, 4294901760
  %128 = vmatpush1.msra.mxu0 %v127
  %129 = vmatprep.subr.mxu0 0.0
  %v130 = vand.u32 %v24, 4294901760
  %v131 = vsub.f32 %v24, %v130
  %v132 = vand.u32 %v131, 4294901760
  %v133 = vsub.f32 %v131, %v132
  %v134 = vand.u32 %v133, 4294901760
  %135 = vmatpush1.msra.mxu0 %v134
  %136 = vmatprep.subr.mxu0 0.0
  %137 = vmatpush1.msra.mxu0 0.0
  %138 = vmatprep.subr.mxu0 0.0
  %139 = vmatpush1.msra.mxu0 0.0
  %140 = vmatprep.subr.mxu0 0.0
  %141 = vmatpush1.msra.mxu0 0.0
  %142 = vmatprep.subr.mxu0 0.0
  %143 = vmatpush1.msra.mxu0 0.0
  %144 = vmatprep.subr.mxu0 0.0
  %145 = vmatpush1.msra.mxu0 0.0
  %146 = vmatprep.subr.mxu0 0.0
  %147 = vmatpush1.msra.mxu0 0.0
  %148 = vmatprep.subr.mxu0 0.0
  %149 = vmatpush1.msra.mxu0 0.0
  %150 = vmatprep.subr.mxu0 0.0
  %151 = vmatpush1.msra.mxu0 0.0
  %152 = vmatprep.subr.mxu0 0.0
  %153 = vmatpush1.msra.mxu0 0.0
  %154 = vmatprep.subr.mxu0 0.0
  %155 = vmatpush1.msra.mxu0 0.0
  %156 = vmatprep.subr.mxu0 0.0
  %157 = vmatpush1.msra.mxu0 0.0
  %158 = vmatprep.subr.mxu0 0.0
  %159 = vmatpush1.msra.mxu0 0.0
  %160 = vmatprep.subr.mxu0 0.0
  %161 = vmatpush1.msra.mxu0 0.0
  %162 = vmatprep.subr.mxu0 0.0
  %163 = vmatpush1.msra.mxu0 0.0
  %164 = vmatprep.subr.mxu0 0.0
  %165 = vmatpush1.msra.mxu0 0.0
  %166 = vmatprep.subr.mxu0 0.0
  %167 = vmatpush1.msra.mxu0 0.0
  %168 = vmatprep.subr.mxu0 0.0
  %169 = vmatpush1.msra.mxu0 0.0
  %170 = vmatprep.subr.mxu0 0.0
  %171 = vmatpush1.msra.mxu0 0.0
  %172 = vmatprep.subr.mxu0 0.0
  %173 = vmatpush1.msra.mxu0 0.0
  %174 = vmatprep.subr.mxu0 0.0
  %175 = vmatpush1.msra.mxu0 0.0
  %176 = vmatprep.subr.mxu0 0.0
  %177 = vmatpush1.msra.mxu0 0.0
  %178 = vmatprep.subr.mxu0 0.0
  %179 = vmatpush1.msra.mxu0 0.0
  %180 = vmatprep.subr.mxu0 0.0
  %181 = vmatpush1.msra.mxu0 0.0
  %182 = vmatprep.subr.mxu0 0.0
  %183 = vmatpush1.msra.mxu0 0.0
  %184 = vmatprep.subr.mxu0 0.0
  %185 = vmatpush1.msra.mxu0 0.0
  %186 = vmatprep.subr.mxu0 0.0
  %187 = vmatpush1.msra.mxu0 0.0
  %188 = vmatprep.subr.mxu0 0.0
  %189 = vmatpush1.msra.mxu0 0.0
  %190 = vmatprep.subr.mxu0 0.0
  %191 = vmatpush1.msra.mxu0 0.0
  %192 = vmatprep.mubr.f32.mxu0 0.0
  %v193 = vand.u32 %v27, 4294901760
  %194 = vmatmul.mubr.f32.gmra.mrb[0].mxu0 %v193
  %v195 = vpop.f32.mrb[0].mxu0
  %v196 = vadd.f32 %v105, %v195
  %v197 = vpop.f32.mrb[0].mxu0
  %198 = vdwg.mxu0
  %199 = vmatprep.subr.mxu0 0.0
  %v200 = vand.u32 %v21, 4294901760
  %v201 = vsub.f32 %v21, %v200
  %202 = vmatpush1.msra.mxu0 %v201
  %203 = vmatprep.subr.mxu0 0.0
  %v204 = vand.u32 %v22, 4294901760
  %v205 = vsub.f32 %v22, %v204
  %206 = vmatpush1.msra.mxu0 %v205
  %207 = vmatprep.subr.mxu0 0.0
  %v208 = vand.u32 %v23, 4294901760
  %v209 = vsub.f32 %v23, %v208
  %210 = vmatpush1.msra.mxu0 %v209
  %211 = vmatprep.subr.mxu0 0.0
  %v212 = vand.u32 %v24, 4294901760
  %v213 = vsub.f32 %v24, %v212
  %214 = vmatpush1.msra.mxu0 %v213
  %215 = vmatprep.subr.mxu0 0.0
  %216 = vmatpush1.msra.mxu0 0.0
  %217 = vmatprep.subr.mxu0 0.0
  %218 = vmatpush1.msra.mxu0 0.0
  %219 = vmatprep.subr.mxu0 0.0
  %220 = vmatpush1.msra.mxu0 0.0
  %221 = vmatprep.subr.mxu0 0.0
  %222 = vmatpush1.msra.mxu0 0.0
  %223 = vmatprep.subr.mxu0 0.0
  %224 = vmatpush1.msra.mxu0 0.0
  %225 = vmatprep.subr.mxu0 0.0
  %226 = vmatpush1.msra.mxu0 0.0
  %227 = vmatprep.subr.mxu0 0.0
  %228 = vmatpush1.msra.mxu0 0.0
  %229 = vmatprep.subr.mxu0 0.0
  %230 = vmatpush1.msra.mxu0 0.0
  %231 = vmatprep.subr.mxu0 0.0
  %232 = vmatpush1.msra.mxu0 0.0
  %233 = vmatprep.subr.mxu0 0.0
  %234 = vmatpush1.msra.mxu0 0.0
  %235 = vmatprep.subr.mxu0 0.0
  %236 = vmatpush1.msra.mxu0 0.0
  %237 = vmatprep.subr.mxu0 0.0
  %238 = vmatpush1.msra.mxu0 0.0
  %239 = vmatprep.subr.mxu0 0.0
  %240 = vmatpush1.msra.mxu0 0.0
  %241 = vmatprep.subr.mxu0 0.0
  %242 = vmatpush1.msra.mxu0 0.0
  %243 = vmatprep.subr.mxu0 0.0
  %244 = vmatpush1.msra.mxu0 0.0
  %245 = vmatprep.subr.mxu0 0.0
  %246 = vmatpush1.msra.mxu0 0.0
  %247 = vmatprep.subr.mxu0 0.0
  %248 = vmatpush1.msra.mxu0 0.0
  %249 = vmatprep.subr.mxu0 0.0
  %250 = vmatpush1.msra.mxu0 0.0
  %251 = vmatprep.subr.mxu0 0.0
  %252 = vmatpush1.msra.mxu0 0.0
  %253 = vmatprep.subr.mxu0 0.0
  %254 = vmatpush1.msra.mxu0 0.0
  %255 = vmatprep.subr.mxu0 0.0
  %256 = vmatpush1.msra.mxu0 0.0
  %257 = vmatprep.subr.mxu0 0.0
  %258 = vmatpush1.msra.mxu0 0.0
  %259 = vmatprep.subr.mxu0 0.0
  %260 = vmatpush1.msra.mxu0 0.0
  %261 = vmatprep.subr.mxu0 0.0
  %262 = vmatpush1.msra.mxu0 0.0
  %263 = vmatprep.subr.mxu0 0.0
  %264 = vmatpush1.msra.mxu0 0.0
  %265 = vmatprep.subr.mxu0 0.0
  %266 = vmatpush1.msra.mxu0 0.0
  %267 = vmatprep.subr.mxu0 0.0
  %268 = vmatpush1.msra.mxu0 0.0
  %269 = vmatprep.subr.mxu0 0.0
  %270 = vmatpush1.msra.mxu0 0.0
  %271 = vmatprep.mubr.f32.mxu0 0.0
  %v272 = vand.u32 %v27, 4294901760
  %v273 = vsub.f32 %v27, %v272
  %274 = vmatmul.mubr.f32.gmra.mrb[0].mxu0 %v273
  %v275 = vpop.f32.mrb[0].mxu0
  %v276 = vadd.f32 %v196, %v275
  %v277 = vpop.f32.mrb[0].mxu0
  %278 = vdwg.mxu0
  %279 = vmatprep.subr.mxu0 0.0
  %v280 = vand.u32 %v21, 4294901760
  %281 = vmatpush1.msra.mxu0 %v280
  %282 = vmatprep.subr.mxu0 0.0
  %v283 = vand.u32 %v22, 4294901760
  %284 = vmatpush1.msra.mxu0 %v283
  %285 = vmatprep.subr.mxu0 0.0
  %v286 = vand.u32 %v23, 4294901760
  %287 = vmatpush1.msra.mxu0 %v286
  %288 = vmatprep.subr.mxu0 0.0
  %v289 = vand.u32 %v24, 4294901760
  %290 = vmatpush1.msra.mxu0 %v289
  %291 = vmatprep.subr.mxu0 0.0
  %292 = vmatpush1.msra.mxu0 0.0
  %293 = vmatprep.subr.mxu0 0.0
  %294 = vmatpush1.msra.mxu0 0.0
  %295 = vmatprep.subr.mxu0 0.0
  %296 = vmatpush1.msra.mxu0 0.0
  %297 = vmatprep.subr.mxu0 0.0
  %298 = vmatpush1.msra.mxu0 0.0
  %299 = vmatprep.subr.mxu0 0.0
  %300 = vmatpush1.msra.mxu0 0.0
  %301 = vmatprep.subr.mxu0 0.0
  %302 = vmatpush1.msra.mxu0 0.0
  %303 = vmatprep.subr.mxu0 0.0
  %304 = vmatpush1.msra.mxu0 0.0
  %305 = vmatprep.subr.mxu0 0.0
  %306 = vmatpush1.msra.mxu0 0.0
  %307 = vmatprep.subr.mxu0 0.0
  %308 = vmatpush1.msra.mxu0 0.0
  %309 = vmatprep.subr.mxu0 0.0
  %310 = vmatpush1.msra.mxu0 0.0
  %311 = vmatprep.subr.mxu0 0.0
  %312 = vmatpush1.msra.mxu0 0.0
  %313 = vmatprep.subr.mxu0 0.0
  %314 = vmatpush1.msra.mxu0 0.0
  %315 = vmatprep.subr.mxu0 0.0
  %316 = vmatpush1.msra.mxu0 0.0
  %317 = vmatprep.subr.mxu0 0.0
  %318 = vmatpush1.msra.mxu0 0.0
  %319 = vmatprep.subr.mxu0 0.0
  %320 = vmatpush1.msra.mxu0 0.0
  %321 = vmatprep.subr.mxu0 0.0
  %322 = vmatpush1.msra.mxu0 0.0
  %323 = vmatprep.subr.mxu0 0.0
  %324 = vmatpush1.msra.mxu0 0.0
  %325 = vmatprep.subr.mxu0 0.0
  %326 = vmatpush1.msra.mxu0 0.0
  %327 = vmatprep.subr.mxu0 0.0
  %328 = vmatpush1.msra.mxu0 0.0
  %329 = vmatprep.subr.mxu0 0.0
  %330 = vmatpush1.msra.mxu0 0.0
  %331 = vmatprep.subr.mxu0 0.0
  %332 = vmatpush1.msra.mxu0 0.0
  %333 = vmatprep.subr.mxu0 0.0
  %334 = vmatpush1.msra.mxu0 0.0
  %335 = vmatprep.subr.mxu0 0.0
  %336 = vmatpush1.msra.mxu0 0.0
  %337 = vmatprep.subr.mxu0 0.0
  %338 = vmatpush1.msra.mxu0 0.0
  %339 = vmatprep.subr.mxu0 0.0
  %340 = vmatpush1.msra.mxu0 0.0
  %341 = vmatprep.subr.mxu0 0.0
  %342 = vmatpush1.msra.mxu0 0.0
  %343 = vmatprep.subr.mxu0 0.0
  %344 = vmatpush1.msra.mxu0 0.0
  %345 = vmatprep.subr.mxu0 0.0
  %346 = vmatpush1.msra.mxu0 0.0
  %347 = vmatprep.mubr.f32.mxu0 0.0
  %v348 = vand.u32 %v27, 4294901760
  %v349 = vsub.f32 %v27, %v348
  %v350 = vand.u32 %v349, 4294901760
  %351 = vmatmul.mubr.f32.gmra.mrb[0].mxu0 %v350
  %v352 = vpop.f32.mrb[0].mxu0
  %v353 = vadd.f32 %v276, %v352
  %v354 = vpop.f32.mrb[0].mxu0
  %355 = vdwg.mxu0
  %356 = vmatprep.subr.mxu0 0.0
  %v357 = vand.u32 %v21, 4294901760
  %v358 = vsub.f32 %v21, %v357
  %v359 = vand.u32 %v358, 4294901760
  %360 = vmatpush1.msra.mxu0 %v359
  %361 = vmatprep.subr.mxu0 0.0
  %v362 = vand.u32 %v22, 4294901760
  %v363 = vsub.f32 %v22, %v362
  %v364 = vand.u32 %v363, 4294901760
  %365 = vmatpush1.msra.mxu0 %v364
  %366 = vmatprep.subr.mxu0 0.0
  %v367 = vand.u32 %v23, 4294901760
  %v368 = vsub.f32 %v23, %v367
  %v369 = vand.u32 %v368, 4294901760
  %370 = vmatpush1.msra.mxu0 %v369
  %371 = vmatprep.subr.mxu0 0.0
  %v372 = vand.u32 %v24, 4294901760
  %v373 = vsub.f32 %v24, %v372
  %v374 = vand.u32 %v373, 4294901760
  %375 = vmatpush1.msra.mxu0 %v374
  %376 = vmatprep.subr.mxu0 0.0
  %377 = vmatpush1.msra.mxu0 0.0
  %378 = vmatprep.subr.mxu0 0.0
  %379 = vmatpush1.msra.mxu0 0.0
  %380 = vmatprep.subr.mxu0 0.0
  %381 = vmatpush1.msra.mxu0 0.0
  %382 = vmatprep.subr.mxu0 0.0
  %383 = vmatpush1.msra.mxu0 0.0
  %384 = vmatprep.subr.mxu0 0.0
  %385 = vmatpush1.msra.mxu0 0.0
  %386 = vmatprep.subr.mxu0 0.0
  %387 = vmatpush1.msra.mxu0 0.0
  %388 = vmatprep.subr.mxu0 0.0
  %389 = vmatpush1.msra.mxu0 0.0
  %390 = vmatprep.subr.mxu0 0.0
  %391 = vmatpush1.msra.mxu0 0.0
  %392 = vmatprep.subr.mxu0 0.0
  %393 = vmatpush1.msra.mxu0 0.0
  %394 = vmatprep.subr.mxu0 0.0
  %395 = vmatpush1.msra.mxu0 0.0
  %396 = vmatprep.subr.mxu0 0.0
  %397 = vmatpush1.msra.mxu0 0.0
  %398 = vmatprep.subr.mxu0 0.0
  %399 = vmatpush1.msra.mxu0 0.0
  %400 = vmatprep.subr.mxu0 0.0
  %401 = vmatpush1.msra.mxu0 0.0
  %402 = vmatprep.subr.mxu0 0.0
  %403 = vmatpush1.msra.mxu0 0.0
  %404 = vmatprep.subr.mxu0 0.0
  %405 = vmatpush1.msra.mxu0 0.0
  %406 = vmatprep.subr.mxu0 0.0
  %407 = vmatpush1.msra.mxu0 0.0
  %408 = vmatprep.subr.mxu0 0.0
  %409 = vmatpush1.msra.mxu0 0.0
  %410 = vmatprep.subr.mxu0 0.0
  %411 = vmatpush1.msra.mxu0 0.0
  %412 = vmatprep.subr.mxu0 0.0
  %413 = vmatpush1.msra.mxu0 0.0
  %414 = vmatprep.subr.mxu0 0.0
  %415 = vmatpush1.msra.mxu0 0.0
  %416 = vmatprep.subr.mxu0 0.0
  %417 = vmatpush1.msra.mxu0 0.0
  %418 = vmatprep.subr.mxu0 0.0
  %419 = vmatpush1.msra.mxu0 0.0
  %420 = vmatprep.subr.mxu0 0.0
  %421 = vmatpush1.msra.mxu0 0.0
  %422 = vmatprep.subr.mxu0 0.0
  %423 = vmatpush1.msra.mxu0 0.0
  %424 = vmatprep.subr.mxu0 0.0
  %425 = vmatpush1.msra.mxu0 0.0
  %426 = vmatprep.subr.mxu0 0.0
  %427 = vmatpush1.msra.mxu0 0.0
  %428 = vmatprep.subr.mxu0 0.0
  %429 = vmatpush1.msra.mxu0 0.0
  %430 = vmatprep.subr.mxu0 0.0
  %431 = vmatpush1.msra.mxu0 0.0
  %432 = vmatprep.mubr.f32.mxu0 0.0
  %v433 = vand.u32 %v27, 4294901760
  %434 = vmatmul.mubr.f32.gmra.mrb[0].mxu0 %v433
  %v435 = vpop.f32.mrb[0].mxu0
  %v436 = vadd.f32 %v353, %v435
  %v437 = vpop.f32.mrb[0].mxu0
  %438 = vdwg.mxu0
  %439 = vmatprep.subr.mxu0 0.0
  %v440 = vand.u32 %v21, 4294901760
  %441 = vmatpush1.msra.mxu0 %v440
  %442 = vmatprep.subr.mxu0 0.0
  %v443 = vand.u32 %v22, 4294901760
  %444 = vmatpush1.msra.mxu0 %v443
  %445 = vmatprep.subr.mxu0 0.0
  %v446 = vand.u32 %v23, 4294901760
  %447 = vmatpush1.msra.mxu0 %v446
  %448 = vmatprep.subr.mxu0 0.0
  %v449 = vand.u32 %v24, 4294901760
  %450 = vmatpush1.msra.mxu0 %v449
  %451 = vmatprep.subr.mxu0 0.0
  %452 = vmatpush1.msra.mxu0 0.0
  %453 = vmatprep.subr.mxu0 0.0
  %454 = vmatpush1.msra.mxu0 0.0
  %455 = vmatprep.subr.mxu0 0.0
  %456 = vmatpush1.msra.mxu0 0.0
  %457 = vmatprep.subr.mxu0 0.0
  %458 = vmatpush1.msra.mxu0 0.0
  %459 = vmatprep.subr.mxu0 0.0
  %460 = vmatpush1.msra.mxu0 0.0
  %461 = vmatprep.subr.mxu0 0.0
  %462 = vmatpush1.msra.mxu0 0.0
  %463 = vmatprep.subr.mxu0 0.0
  %464 = vmatpush1.msra.mxu0 0.0
  %465 = vmatprep.subr.mxu0 0.0
  %466 = vmatpush1.msra.mxu0 0.0
  %467 = vmatprep.subr.mxu0 0.0
  %468 = vmatpush1.msra.mxu0 0.0
  %469 = vmatprep.subr.mxu0 0.0
  %470 = vmatpush1.msra.mxu0 0.0
  %471 = vmatprep.subr.mxu0 0.0
  %472 = vmatpush1.msra.mxu0 0.0
  %473 = vmatprep.subr.mxu0 0.0
  %474 = vmatpush1.msra.mxu0 0.0
  %475 = vmatprep.subr.mxu0 0.0
  %476 = vmatpush1.msra.mxu0 0.0
  %477 = vmatprep.subr.mxu0 0.0
  %478 = vmatpush1.msra.mxu0 0.0
  %479 = vmatprep.subr.mxu0 0.0
  %480 = vmatpush1.msra.mxu0 0.0
  %481 = vmatprep.subr.mxu0 0.0
  %482 = vmatpush1.msra.mxu0 0.0
  %483 = vmatprep.subr.mxu0 0.0
  %484 = vmatpush1.msra.mxu0 0.0
  %485 = vmatprep.subr.mxu0 0.0
  %486 = vmatpush1.msra.mxu0 0.0
  %487 = vmatprep.subr.mxu0 0.0
  %488 = vmatpush1.msra.mxu0 0.0
  %489 = vmatprep.subr.mxu0 0.0
  %490 = vmatpush1.msra.mxu0 0.0
  %491 = vmatprep.subr.mxu0 0.0
  %492 = vmatpush1.msra.mxu0 0.0
  %493 = vmatprep.subr.mxu0 0.0
  %494 = vmatpush1.msra.mxu0 0.0
  %495 = vmatprep.subr.mxu0 0.0
  %496 = vmatpush1.msra.mxu0 0.0
  %497 = vmatprep.subr.mxu0 0.0
  %498 = vmatpush1.msra.mxu0 0.0
  %499 = vmatprep.subr.mxu0 0.0
  %500 = vmatpush1.msra.mxu0 0.0
  %501 = vmatprep.subr.mxu0 0.0
  %502 = vmatpush1.msra.mxu0 0.0
  %503 = vmatprep.subr.mxu0 0.0
  %504 = vmatpush1.msra.mxu0 0.0
  %505 = vmatprep.subr.mxu0 0.0
  %506 = vmatpush1.msra.mxu0 0.0
  %507 = vmatprep.mubr.f32.mxu0 0.0
  %v508 = vand.u32 %v27, 4294901760
  %509 = vmatmul.mubr.f32.gmra.mrb[0].mxu0 %v508
  %v510 = vpop.f32.mrb[0].mxu0
  %v511 = vadd.f32 %v436, %v510
  %v512 = vpop.f32.mrb[0].mxu0
  %513 = vdwg.mxu0
  %v514 = vlaneseq
  %v515 = vand.u32 %v514, 127
  %v516 = vstv %s12
  %v517 = vadd.s32 %v516, %v515
  %s518 = sadd.s32 %s12, 8
  %p519 = scmp.lt.s32.totalorder %s11, %s518
  %s520 = sadd.s32 %s11, 8
  %p521 = scmp.lt.s32.totalorder %s12, %s520
  %p522 = pnand %p519, %p521
  %p523 = pneg %p522
  // Predicated region
  $region14: #{tpu_custom_call.1} parent=0 // pred_check
    _
  $region15: #{tpu_custom_call.1} parent=0 // pred_check_branch
    %525 = sbr.rel (%p522) target = $region17
  $region16: #{tpu_custom_call.1} parent=0 // pred_region
    %v526 = vlaneseq
    %v527 = vshrl.u32 %v526, 7
    %v528 = vstv %s11
    %v529 = vadd.s32 %v528, %v527
    %vm530 = vcmp.eq.s32.totalorder %v529, %v517
    %v531 = vsel %vm530, -1.0, %v511
    %vm532 = vcmask 64512
    %v533 = vsel %vm532, %v531, -inf
    %534 = vmax.xlane.f32.xlu0 %v533
    %v535 = vpop.xlane.xlu0 %534
    %vm536 = vcmp.eq.f32.partialorder %v531, %v535
    %v537 = vsel %vm536, %v517, 2147483647
    %v538 = vsel %vm532, %v537, 2147483647
    %v539 = vand.u32 %v538, 65535
    %v540 = vshra.s32 %v538, 16
    %v541 = vcvt.s32.f32 %v539
    %v542 = vcvt.s32.f32 %v540
    %543 = vmin.xlane.f32.xlu0 %v542
    %v544 = vpop.xlane.xlu0 %543
    %vm545 = vcmp.eq.f32.partialorder %v542, %v544
    %v546 = vsel %vm545, %v541, inf
    %547 = vmin.xlane.f32.xlu0 %v546
    %v548 = vpop.xlane.xlu0 %547
    %v549 = vcvt.f32.s32 %v548
    %v550 = vcvt.f32.s32 %v544
    %v551 = vshll.u32 %v550, 16
    %v552 = vadd.s32 %v551, %v549
    %v553 = vld [vmem:[#allocation2] sm:$0xff]
    %vm554 = vcmp.gt.f32.partialorder %v535, %v553
    %v555 = vld [vmem:[%s2] sm:$0xff]
    %v556 = vsel %vm554, %v552, %v555
    %vm557 = vcmask 7168
    %558 = vst.msk [vmem:[%s2] sm:$0xff] %vm557, %v556
    %v559 = vld [vmem:[#allocation2] sm:$0xff]
    %v560 = vsel %vm554, %v535, %v559
    %561 = vst.msk [vmem:[#allocation2] sm:$0xff] %vm557, %v560
  $region17: #{tpu_custom_call.1} parent=0 // pred_fallthru
    _
  %p562 = pneg %p523
  // Predicated region
  $region18: #{tpu_custom_call.1} parent=0 // pred_check
    _
  $region19: #{tpu_custom_call.1} parent=0 // pred_check_branch
    %564 = sbr.rel (%p523) target = $region21
  $region20: #{tpu_custom_call.1} parent=0 // pred_region
    %vm565 = vcmask 64512
    %v566 = vsel %vm565, %v511, -inf
    %567 = vmax.xlane.f32.xlu0 %v566
    %v568 = vpop.xlane.xlu0 %567
    %vm569 = vcmp.eq.f32.partialorder %v511, %v568
    %v570 = vsel %vm569, %v517, 2147483647
    %v571 = vsel %vm565, %v570, 2147483647
    %v572 = vand.u32 %v571, 65535
    %v573 = vshra.s32 %v571, 16
    %v574 = vcvt.s32.f32 %v572
    %v575 = vcvt.s32.f32 %v573
    %576 = vmin.xlane.f32.xlu0 %v575
    %v577 = vpop.xlane.xlu0 %576
    %vm578 = vcmp.eq.f32.partialorder %v575, %v577
    %v579 = vsel %vm578, %v574, inf
    %580 = vmin.xlane.f32.xlu0 %v579
    %v581 = vpop.xlane.xlu0 %580
    %v582 = vcvt.f32.s32 %v581
    %v583 = vcvt.f32.s32 %v577
    %v584 = vshll.u32 %v583, 16
    %v585 = vadd.s32 %v584, %v582
    %v586 = vld [vmem:[#allocation2] sm:$0xff]
    %vm587 = vcmp.gt.f32.partialorder %v568, %v586
    %v588 = vld [vmem:[%s2] sm:$0xff]
    %v589 = vsel %vm587, %v585, %v588
    %vm590 = vcmask 7168
    %591 = vst.msk [vmem:[%s2] sm:$0xff] %vm590, %v589
    %v592 = vld [vmem:[#allocation2] sm:$0xff]
    %v593 = vsel %vm587, %v568, %v592
    %594 = vst.msk [vmem:[#allocation2] sm:$0xff] %vm590, %v593
  $region21: #{tpu_custom_call.1} parent=0 // pred_fallthru
    _
  // Predicated region
  $region22: #{tpu_custom_call.1} parent=0 // pred_check
    _
  $region23: #{tpu_custom_call.1} parent=0 // pred_check_branch
    %596 = sbr.rel (0) target = $region25
  $region24: #{tpu_custom_call.1} parent=0 // pred_region
    _
  $region25: #{tpu_custom_call.1} parent=0 // pred_fallthru
    _
  // Predicated region
  $region26: #{tpu_custom_call.1} parent=0 // pred_check
    _
  $region27: #{tpu_custom_call.1} parent=0 // pred_check_branch
    %598 = sbr.rel (0) target = $region29
  $region28: #{tpu_custom_call.1} parent=0 // pred_region
    _
  $region29: #{tpu_custom_call.1} parent=0 // pred_fallthru
    _

</llo_original>
